<compile_context>
chip_gen: v7x
topology: tpu7x:2x2x1
jax: 0.10.0
libtpu: 0.0.40
codegen_flags: <defaults>
</compile_context>

<pallas_src>
import functools

import jax
import jax.numpy as jnp
from jax.experimental import pallas as pl
from jax.experimental.pallas import tpu as pltpu

_EPS = 1e-6  # F.pairwise_distance default eps


def _contrastive_loss_kernel(x1_ref, x2_ref, lm_ref, out_ref, *, margin):
    # x1_ref/x2_ref: (TB, D) input tiles; lm_ref: (TB, 2) = [label, valid-mask];
    # out_ref: (1, 8, 128) lane-dense partial-sum slab for this grid step.
    x1 = x1_ref[...].astype(jnp.float32)
    x2 = x2_ref[...].astype(jnp.float32)
    lm = lm_ref[...].astype(jnp.float32)
    lab = lm[:, 0:1]      # (TB, 1)
    valid = lm[:, 1:2]    # (TB, 1) -> 0.0 for padded rows

    diff = x1 - x2 + _EPS                                   # matches torch's (x1 - x2 + eps)
    d2 = jnp.sum(diff * diff, axis=-1, keepdims=True)       # (TB, 1), XLU lane-reduce
    d = jnp.sqrt(d2)                                        # EUP slot, off the VALU path
    hinge = jnp.maximum(margin - d, 0.0)

    # Reuse d2 directly for the similar-pair term (no sqrt -> square round trip).
    per_row = valid * ((1.0 - lab) * d2 + lab * (hinge * hinge))   # (TB, 1)
    partial = jnp.sum(per_row)                                     # scalar partial sum

    # Lane/sublane-dense store: avoids the masked partial-store path of a (1,1) output.
    out_ref[...] = jnp.broadcast_to(partial, out_ref.shape).astype(jnp.float32)


def _round_up(x, m):
    return ((x + m - 1) // m) * m


def _choose_block_rows(b, d, in_dtype, vmem_budget_bytes=16 * 1024 * 1024):
    """Largest batch tile (multiple of 8) fitting a conservative double-buffered VMEM budget."""
    itemsize = jnp.dtype(in_dtype).itemsize
    lanes = max(_round_up(d, 128), 128)              # lane padding for small D
    # 2 inputs x 2 pipeline buffers + label/mask slab (padded to 128 lanes f32, 2 buffers)
    per_row = 2 * 2 * lanes * itemsize + 2 * 128 * 4
    tb = vmem_budget_bytes // per_row
    tb = max(8, min(int(tb), 2048))
    tb = (tb // 8) * 8
    tb = min(tb, _round_up(b, 8))
    return tb


def contrastive_loss(output1, output2, label, margin=1.0, block_rows=None):
    B, D = output1.shape
    tb = block_rows if block_rows is not None else _choose_block_rows(B, D, output1.dtype)
    assert tb % 8 == 0 and tb >= 8
    b_pad = _round_up(B, tb)
    g = b_pad // tb

    # Pack label + validity mask side by side so padded rows contribute exactly 0.
    lab = label.reshape(B).astype(jnp.float32)
    valid = jnp.ones((B,), jnp.float32)
    lm = jnp.stack([lab, valid], axis=-1)                      # (B, 2)

    pad = b_pad - B
    if pad:
        output1 = jnp.pad(output1, ((0, pad), (0, 0)))
        output2 = jnp.pad(output2, ((0, pad), (0, 0)))
        lm = jnp.pad(lm, ((0, pad), (0, 0)))                   # padded rows: label=0, valid=0

    kernel = functools.partial(_contrastive_loss_kernel, margin=float(margin))

    partials = pl.pallas_call(
        kernel,
        out_shape=jax.ShapeDtypeStruct((g, 8, 128), jnp.float32),
        grid_spec=pltpu.PrefetchScalarGridSpec(
            num_scalar_prefetch=0,
            grid=(g,),
            in_specs=[
                pl.BlockSpec((tb, D), lambda i: (i, 0)),
                pl.BlockSpec((tb, D), lambda i: (i, 0)),
                pl.BlockSpec((tb, 2), lambda i: (i, 0)),
            ],
            out_specs=pl.BlockSpec((1, 8, 128), lambda i: (i, 0, 0)),
        ),
        compiler_params=pltpu.CompilerParams(
            dimension_semantics=("parallel",),       # per-block partial sums -> megacore-safe
            vmem_limit_bytes=32 * 1024 * 1024,
        ),
    )(output1, output2, lm)

    # Tiny final reduction in the wrapper; divide by the *real* batch size.
    return jnp.sum(partials[:, 0, 0]) / B


def _reference(output1, output2, label, margin=1.0):
    # Pure-JAX reference mirroring the PyTorch module.
    d = jnp.sqrt(jnp.sum((output1 - output2 + _EPS) ** 2, axis=-1))
    return jnp.mean((1.0 - label) * d**2 + label * jnp.clip(margin - d, 0.0) ** 2)


if __name__ == "__main__":
    key = jax.random.PRNGKey(0)
    k1, k2, k3 = jax.random.split(key, 3)

    # Small shapes consistent with the module: batch=8, hidden=32.
    B, D = 8, 32
    output1 = jax.random.normal(k1, (B, D), dtype=jnp.float32)
    output2 = jax.random.normal(k2, (B, D), dtype=jnp.float32)
    label = jax.random.bernoulli(k3, 0.5, (B,)).astype(jnp.float32)

    loss = jax.block_until_ready(contrastive_loss(output1, output2, label))
    ref = _reference(output1, output2, label)
    assert jnp.allclose(loss, ref, rtol=1e-5, atol=1e-5), (loss, ref)

    # Also exercise the multi-block + padding path (B=20 -> padded to 24, 3 blocks of 8 rows).
    k4, k5, k6 = jax.random.split(jax.random.PRNGKey(1), 3)
    B2, D2 = 20, 32
    o1 = jax.random.normal(k4, (B2, D2), dtype=jnp.float32)
    o2 = jax.random.normal(k5, (B2, D2), dtype=jnp.float32)
    lab2 = jax.random.bernoulli(k6, 0.5, (B2,)).astype(jnp.float32)
    loss2 = jax.block_until_ready(contrastive_loss(o1, o2, lab2, block_rows=8))
    ref2 = _reference(o1, o2, lab2)
    assert jnp.allclose(loss2, ref2, rtol=1e-5, atol=1e-5), (loss2, ref2)

    # TODO(synk): for very small D, fold multiple rows into the 128-lane dim (segmented
    # reduce) to recover lane utilization; skipped to keep the row reduction simple.
    print("KERNEL_OK")
</pallas_src>

<mosaic_0001>
module attributes {stable_mosaic.version = 11 : i64} {
  func.func @_contrastive_loss_kernel(%arg0: i32, %arg1: memref<8x32xf32, #tpu.memory_space<vmem>>, %arg2: memref<8x32xf32, #tpu.memory_space<vmem>>, %arg3: memref<8x2xf32, #tpu.memory_space<vmem>>, %arg4: memref<1x8x128xf32, #tpu.memory_space<vmem>>) attributes {dimension_semantics = [#tpu.dimension_semantics<parallel>], iteration_bounds = array<i64: 1>, scalar_prefetch = 0 : i64, scratch_operands = 0 : i64, tpu.core_type = #tpu.core_type<tc>, window_params = [{transform_indices = @transform_0, window_bounds = array<i64: 8, 32>}, {transform_indices = @transform_1, window_bounds = array<i64: 8, 32>}, {transform_indices = @transform_2, window_bounds = array<i64: 8, 2>}, {transform_indices = @transform_3, window_bounds = array<i64: 1, 8, 128>}]} {
    %c0 = arith.constant 0 : index
    %c0_0 = arith.constant 0 : index
    %0 = vector.load %arg1[%c0, %c0_0] : memref<8x32xf32, #tpu.memory_space<vmem>>, vector<8x32xf32>
    %c0_1 = arith.constant 0 : index
    %c0_2 = arith.constant 0 : index
    %1 = vector.load %arg2[%c0_1, %c0_2] : memref<8x32xf32, #tpu.memory_space<vmem>>, vector<8x32xf32>
    %c0_3 = arith.constant 0 : index
    %c0_4 = arith.constant 0 : index
    %2 = vector.load %arg3[%c0_3, %c0_4] : memref<8x2xf32, #tpu.memory_space<vmem>>, vector<8x2xf32>
    %3 = vector.extract_strided_slice %2 {offsets = [0, 0], sizes = [8, 1], strides = [1, 1]} : vector<8x2xf32> to vector<8x1xf32>
    %4 = vector.extract_strided_slice %2 {offsets = [0, 1], sizes = [8, 1], strides = [1, 1]} : vector<8x2xf32> to vector<8x1xf32>
    %5 = arith.subf %0, %1 : vector<8x32xf32>
    %cst = arith.constant 9.99999997E-7 : f32
    %6 = vector.broadcast %cst : f32 to vector<8x32xf32>
    %7 = arith.addf %5, %6 : vector<8x32xf32>
    %8 = arith.mulf %7, %7 : vector<8x32xf32>
    %cst_5 = arith.constant dense<0.000000e+00> : vector<8xf32>
    %9 = vector.multi_reduction <add>, %8, %cst_5 [1] : vector<8x32xf32> to vector<8xf32>
    %10 = vector.shape_cast %9 : vector<8xf32> to vector<8x1xf32>
    %11 = math.sqrt %10 : vector<8x1xf32>
    %cst_6 = arith.constant 1.000000e+00 : f32
    %12 = vector.broadcast %cst_6 : f32 to vector<8x1xf32>
    %13 = arith.subf %12, %11 : vector<8x1xf32>
    %cst_7 = arith.constant 0.000000e+00 : f32
    %14 = vector.broadcast %cst_7 : f32 to vector<8x1xf32>
    %15 = arith.maximumf %13, %14 : vector<8x1xf32>
    %cst_8 = arith.constant 1.000000e+00 : f32
    %16 = vector.broadcast %cst_8 : f32 to vector<8x1xf32>
    %17 = arith.subf %16, %3 : vector<8x1xf32>
    %18 = arith.mulf %17, %10 : vector<8x1xf32>
    %19 = arith.mulf %15, %15 : vector<8x1xf32>
    %20 = arith.mulf %3, %19 : vector<8x1xf32>
    %21 = arith.addf %18, %20 : vector<8x1xf32>
    %22 = arith.mulf %4, %21 : vector<8x1xf32>
    %23 = vector.shape_cast %22 : vector<8x1xf32> to vector<1x8x1xf32>
    %cst_9 = arith.constant dense<0.000000e+00> : vector<1xf32>
    %24 = vector.multi_reduction <add>, %23, %cst_9 [1, 2] : vector<1x8x1xf32> to vector<1xf32>
    %25 = vector.shape_cast %24 : vector<1xf32> to vector<1x1x1xf32>
    %26 = vector.extract %25[0, 0, 0] : f32 from vector<1x1x1xf32>
    %27 = vector.broadcast %26 : f32 to vector<1x8x128xf32>
    %c0_10 = arith.constant 0 : index
    %c0_11 = arith.constant 0 : index
    %c0_12 = arith.constant 0 : index
    %28 = vector.load %arg4[%c0_10, %c0_11, %c0_12] : memref<1x8x128xf32, #tpu.memory_space<vmem>>, vector<1x8x128xf32>
    tpu.vector_store %arg4[%c0_10, %c0_11, %c0_12], %27 {strides = array<i32>} : memref<1x8x128xf32, #tpu.memory_space<vmem>>, vector<1x8x128xf32>,
    return
  }
  func.func @transform_0(%arg0: i32) -> (i32, i32) {
    %c0_i32 = arith.constant 0 : i32
    %c0_i32_0 = arith.constant 0 : i32
    return %arg0, %c0_i32 : i32, i32
  }
  func.func @transform_1(%arg0: i32) -> (i32, i32) {
    %c0_i32 = arith.constant 0 : i32
    %c0_i32_0 = arith.constant 0 : i32
    return %arg0, %c0_i32 : i32, i32
  }
  func.func @transform_2(%arg0: i32) -> (i32, i32) {
    %c0_i32 = arith.constant 0 : i32
    %c0_i32_0 = arith.constant 0 : i32
    return %arg0, %c0_i32 : i32, i32
  }
  func.func @transform_3(%arg0: i32) -> (i32, i32, i32) {
    %c0_i32 = arith.constant 0 : i32
    %c0_i32_0 = arith.constant 0 : i32
    %c0_i32_1 = arith.constant 0 : i32
    return %arg0, %c0_i32, %c0_i32_0 : i32, i32, i32
  }
}

</mosaic_0001>

<llo_original>
// kernel: tpu_custom_call.1
$region0: #{tpu_custom_call.1}
  #allocation0 [shape = 'u32[]', space=smem, size = 0x4, offset = 0x4, fixed_abs, tag = 'smem constant byte address 0x4 - core index']
  #allocation1 [shape = 'u32[144,128]{1,0:T(1,128)}', space=vmem, size = 0x12000, scoped, tag = 'internal scratch']
  %s0 = inlined_call_operand.vmem [shape: f32[8,32], index: 0, kind: input, shape index: {}]
  %s1 = inlined_call_operand.hbm [shape: f32[8,32], index: 1, kind: input, shape index: {}]
  %s2 = inlined_call_operand.vmem [shape: f32[8,2], index: 2, kind: input, shape index: {}]
  %s3 = inlined_call_operand.hbm [shape: f32[1,8,128], index: 3, kind: output, shape index: {}]
  %s4 = sld [smem:[#allocation0]]
  $region26: #{tpu_custom_call.1} parent=0
    _
  %s6 = ssub.s32 1, %s4
  %s7 = scalar_select 0, %s6, %s4
  $region1: #{tpu_custom_call.1} parent=0
    #allocation2 [shape = 'u8[4096]{0}', space=vmem, size = 0x1000, scoped, tag = 'input window, operand 1, single buffered']
    #allocation3 [shape = 's32[1]{0}', space=sflag, size = 0x4, scoped, tag = 'scoped memory for tpu_custom_call.1']
    #allocation4 [shape = 's32[1]{0}', space=sflag, size = 0x4, scoped, tag = 'scoped memory for tpu_custom_call.1']
    #allocation5 [shape = 'u8[4096]{0}', space=vmem, size = 0x1000, scoped, tag = 'output window, operand 0, single buffered']
    %8 = vsyncpa [#allocation3], 0
    %9 = vsyncpa [#allocation4], 0
    // Predicated region
    $region2: #{tpu_custom_call.1} parent=1 // pred_check
      _
    $region3: #{tpu_custom_call.1} parent=1 // pred_check_branch
      %11 = sbr.rel (0) target = $region5
    $region4: #{tpu_custom_call.1} parent=1 // pred_region
      _
    $region5: #{tpu_custom_call.1} parent=1 // pred_fallthru
      _
    // Predicated region
    $region6: #{tpu_custom_call.1} parent=1 // pred_check
      _
    $region7: #{tpu_custom_call.1} parent=1 // pred_check_branch
      %13 = sbr.rel (0) target = $region9
    $region8: #{tpu_custom_call.1} parent=1 // pred_region
      %s15 = ssub.s32 128, 128
      %16 = vsyncadd [#allocation3], %s15
      %s18 = sshll.u32 [#allocation2], 4
      %s19 = int_to_ptr.vmem [resolvable:$true] %s18
      %21 = dma.hbm_to_vmem [thread:$0]  %s1, 128, %s19, [#allocation3]
    $region9: #{tpu_custom_call.1} parent=1 // pred_fallthru
      _
    // Predicated region
    $region10: #{tpu_custom_call.1} parent=1 // pred_check
      _
    $region11: #{tpu_custom_call.1} parent=1 // pred_check_branch
      %23 = sbr.rel (0) target = $region13
    $region12: #{tpu_custom_call.1} parent=1 // pred_region
      _
    $region13: #{tpu_custom_call.1} parent=1 // pred_fallthru
      _
    // Predicated region
    $region14: #{tpu_custom_call.1} parent=1 // pred_check
      _
    $region15: #{tpu_custom_call.1} parent=1 // pred_check_branch
      %25 = sbr.rel (0) target = $region17
    $region16: #{tpu_custom_call.1} parent=1 // pred_region
      %26 = dma.done [#allocation3], 128
    $region17: #{tpu_custom_call.1} parent=1 // pred_fallthru
      _
    %v27 = vld [vmem:[%s0] sm:$0xff]
    %v28 = vld [vmem:[#allocation2] sm:$0xff]
    %v29 = vld [vmem:[%s2] sm:$0xff]
    %v30 = vsub.f32 %v27, %v28
    %v31 = vadd.f32 %v30, 1e-06
    %v32 = vmul.f32 %v31, %v31
    %vm33 = vcmask 261120
    %v34 = vsel %vm33, %v32, 0.0
    %35 = vadd.xlane.f32.xlu0 %v34
    %v36 = vpop.xlane.xlu0 %35
    %v37 = vrsqrt.pop %v36
    %v38 = vmul.f32 %v36, %v37
    %vm39 = vcmp.eq.f32.partialorder %v36, inf
    %v40 = vsel %vm39, %v36, %v38
    %vm41 = vcmp.eq.f32.partialorder %v36, 0.0
    %v42 = vand.u32 %v36, 2147483648
    %v43 = vsel %vm41, %v42, %v40
    %v44 = vsub.f32 1.0, %v43
    %v45 = vmax.f32 %v44, 0.0
    %v46 = vsub.f32 1.0, %v29
    %v47 = vmul.f32 %v46, %v36
    %v48 = vmul.f32 %v45, %v45
    %v49 = vmul.f32 %v29, %v48
    %v50 = vadd.f32 %v47, %v49
    %52 = vrot.lane.b32.xlu0 %v50, 1
    %v53 = vpop.permute.xlu0 %52
    %v55 = vmul.f32 %v29, %v53
    %57 = vrot.lane.b32.xlu0 %v55, 127
    %v58 = vpop.permute.xlu0 %57
    %vm60 = vcmask 7168
    %v61 = vsel %vm60, %v58, 0.0
    %62 = vadd.xlane.f32.xlu0 %v61
    %v63 = vpop.xlane.xlu0 %62
    %v64 = vrot.slane %v63, 4
    %v65 = vadd.f32 %v63, %v64
    %v66 = vrot.slane %v65, 2
    %v67 = vadd.f32 %v65, %v66
    %v68 = vrot.slane %v67, 1
    %v69 = vadd.f32 %v67, %v68
    %s70 = vtos %v69
    %v71 = vstv %s70
    %72 = vst [vmem:[#allocation5] sm:$0xff] %v71
    // Predicated region
    $region18: #{tpu_custom_call.1} parent=1 // pred_check
      _
    $region19: #{tpu_custom_call.1} parent=1 // pred_check_branch
      %74 = sbr.rel (0) target = $region21
    $region20: #{tpu_custom_call.1} parent=1 // pred_region
      %s76 = ssub.s32 128, 128
      %77 = vsyncadd [#allocation4], %s76
      %s79 = sshll.u32 [#allocation5], 4
      %s80 = int_to_ptr.vmem [resolvable:$true] %s79
      %82 = dma.vmem_to_hbm [thread:$0]  %s80, 128, %s3, [#allocation4]
    $region21: #{tpu_custom_call.1} parent=1 // pred_fallthru
      _
    // Predicated region
    $region22: #{tpu_custom_call.1} parent=1 // pred_check
      _
    $region23: #{tpu_custom_call.1} parent=1 // pred_check_branch
      %84 = sbr.rel (0) target = $region25
    $region24: #{tpu_custom_call.1} parent=1 // pred_region
      %85 = dma.done [#allocation4], 128
    $region25: #{tpu_custom_call.1} parent=1 // pred_fallthru
      _
    %86 = vsyncpa [#allocation3], 1
    %87 = vsyncpa [#allocation4], 1

</llo_original>
